<compile_context>
chip_gen: v6e
topology: v6e:2x2x1
jax: 0.10.0
libtpu: 0.0.40
codegen_flags: <defaults>
</compile_context>

<pallas_src>
import functools

import jax
import jax.numpy as jnp
from jax.experimental import pallas as pl
from jax.experimental.pallas import tpu as pltpu


def _factor_out_k(num_channels: int) -> int:
    # k = C // 2 ; k += k % 2   (same as the PyTorch module)
    k = num_channels // 2
    k += k % 2
    return k


# ----------------------------- kernel ----------------------------------------


def _split_kernel(x_ref, flat_ref, rest_ref, *, k):
    # x_ref: (TB, C, HW) -- lane axis is HW (lane-dense).
    # Slice the Ref directly (no full-tile materialization): each half is
    # loaded and stored before the other half is touched.
    flat_ref[...] = x_ref[:, :k, :]
    rest_ref[...] = x_ref[:, k:, :]


# ----------------------------- wrapper ----------------------------------------


def _choose_batch_tile(batch, per_example_bytes, target_bytes=6 * 1024 * 1024):
    """Largest divisor of `batch` whose block stays under the VMEM target and
    leaves >= 2 grid steps (so both TensorCores on v7x get work)."""
    min_steps = 2 if batch >= 2 else 1
    best = 1
    for tb in range(1, batch + 1):
        if batch % tb != 0:
            continue
        if batch // tb < min_steps:
            continue
        if tb * per_example_bytes > target_bytes:
            continue
        best = max(best, tb)
    return best


def cond_factor_out(x, y, log_det_jac, z):
    """Pallas implementation of CondFactorOut.forward.

    Args:
      x:            (B, C, H, W)
      y:            unused (signature parity with the PyTorch module)
      log_det_jac:  passed through unchanged
      z:            None or (B, Z)

    Returns:
      (x_rest, log_det_jac, z_new) with
        x_rest : (B, C - k, H, W)
        z_new  : (B, Z + k*H*W)   (Z == 0 when z is None)
    """
    del y  # unused, same as the reference forward
    B, C, H, W = x.shape
    k = _factor_out_k(C)
    rest_c = C - k
    HW = H * W
    flat_dim = k * HW

    # Degenerate channel counts: a zero-sized block dim would break Pallas, and
    # these are plain contiguous slices that XLA already does at bandwidth.
    if k == 0 or rest_c == 0:
        rest = x[:, k:]
        flat = x[:, :k].reshape(B, flat_dim)
        z_new = flat if z is None else jnp.concatenate([z, flat], axis=1)
        return rest, log_det_jac, z_new

    # Lane-dense layout: flatten H*W onto the lane axis in the wrapper (free
    # HBM layout plumbing); the in-kernel "reshape" becomes a no-op.
    x3 = x.reshape(B, C, HW)

    itemsize = jnp.dtype(x.dtype).itemsize
    per_example_bytes = 2 * C * HW * itemsize  # x block + (flat + rest) blocks
    TB = _choose_batch_tile(B, per_example_bytes)
    grid = (B // TB,)

    flat3, rest3 = pl.pallas_call(
        functools.partial(_split_kernel, k=k),
        out_shape=(
            jax.ShapeDtypeStruct((B, k, HW), x.dtype),
            jax.ShapeDtypeStruct((B, rest_c, HW), x.dtype),
        ),
        grid=grid,
        in_specs=[pl.BlockSpec((TB, C, HW), lambda b: (b, 0, 0))],
        out_specs=(
            pl.BlockSpec((TB, k, HW), lambda b: (b, 0, 0)),
            pl.BlockSpec((TB, rest_c, HW), lambda b: (b, 0, 0)),
        ),
        compiler_params=pltpu.CompilerParams(
            dimension_semantics=("parallel",),
            vmem_limit_bytes=32 * 1024 * 1024,
        ),
    )(x3)

    rest = rest3.reshape(B, rest_c, H, W)
    flat = flat3.reshape(B, flat_dim)

    # Tiny z concat (with jnp.concatenate's dtype promotion) done in the
    # wrapper so the big flat write in the kernel stays 128-lane aligned.
    z_new = flat if z is None else jnp.concatenate([z, flat], axis=1)
    return rest, log_det_jac, z_new


# ----------------------------- reference (plain JAX) --------------------------


def _reference(x, log_det_jac, z):
    B, C, H, W = x.shape
    k = _factor_out_k(C)
    flat = x[:, :k].reshape(B, -1)
    z_new = flat if z is None else jnp.concatenate([z, flat], axis=1)
    return x[:, k:], log_det_jac, z_new


if __name__ == "__main__":
    key = jax.random.PRNGKey(0)
    kx, ky, kz = jax.random.split(key, 3)

    B, C, H, W = 2, 4, 16, 16
    Z = 8

    x = jax.random.normal(kx, (B, C, H, W), dtype=jnp.float32)
    y = jax.random.normal(ky, (B, 3), dtype=jnp.float32)  # conditioning, unused
    log_det_jac = jnp.zeros((B,), dtype=jnp.float32)
    z = jax.random.normal(kz, (B, Z), dtype=jnp.float32)

    # --- case 1: z provided ---
    rest, ldj, z_new = cond_factor_out(x, y, log_det_jac, z)
    jax.block_until_ready((rest, ldj, z_new))
    ref_rest, ref_ldj, ref_z = _reference(x, log_det_jac, z)
    assert rest.shape == ref_rest.shape and z_new.shape == ref_z.shape
    assert jnp.array_equal(rest, ref_rest)
    assert jnp.array_equal(z_new, ref_z)
    assert jnp.array_equal(ldj, ref_ldj)

    # --- case 2: z is None ---
    rest2, ldj2, z2 = cond_factor_out(x, y, log_det_jac, None)
    jax.block_until_ready((rest2, ldj2, z2))
    ref_rest2, _, ref_z2 = _reference(x, log_det_jac, None)
    assert jnp.array_equal(rest2, ref_rest2)
    assert jnp.array_equal(z2, ref_z2)

    # --- case 3: degenerate channel count (rest_c == 0) guarded in wrapper ---
    x_c2 = jax.random.normal(kx, (B, 2, H, W), dtype=jnp.float32)
    rest3, _, z3 = cond_factor_out(x_c2, y, log_det_jac, z)
    jax.block_until_ready((rest3, z3))
    ref_rest3, _, ref_z3 = _reference(x_c2, log_det_jac, z)
    assert rest3.shape == ref_rest3.shape
    assert jnp.array_equal(z3, ref_z3)

    # TODO(synk): the inverse `g` method of the module is not implemented here
    # (forward-pass only, per the task).

    print("KERNEL_OK")
</pallas_src>

<mosaic_0001>
module attributes {stable_mosaic.version = 11 : i64} {
  func.func @_split_kernel(%arg0: i32, %arg1: memref<1x4x256xf32, #tpu.memory_space<vmem>>, %arg2: memref<1x2x256xf32, #tpu.memory_space<vmem>>, %arg3: memref<1x2x256xf32, #tpu.memory_space<vmem>>) attributes {dimension_semantics = [#tpu.dimension_semantics<parallel>], iteration_bounds = array<i64: 2>, scalar_prefetch = 0 : i64, scratch_operands = 0 : i64, tpu.core_type = #tpu.core_type<tc>, window_params = [{transform_indices = @transform_0, window_bounds = array<i64: 1, 4, 256>}, {transform_indices = @transform_1, window_bounds = array<i64: 1, 2, 256>}, {transform_indices = @transform_2, window_bounds = array<i64: 1, 2, 256>}]} {
    %c0 = arith.constant 0 : index
    %c0_0 = arith.constant 0 : index
    %c0_1 = arith.constant 0 : index
    %0 = vector.load %arg1[%c0, %c0_0, %c0_1] : memref<1x4x256xf32, #tpu.memory_space<vmem>>, vector<1x2x256xf32>
    %c0_2 = arith.constant 0 : index
    %c0_3 = arith.constant 0 : index
    %c0_4 = arith.constant 0 : index
    %1 = vector.load %arg2[%c0_2, %c0_3, %c0_4] : memref<1x2x256xf32, #tpu.memory_space<vmem>>, vector<1x2x256xf32>
    tpu.vector_store %arg2[%c0_2, %c0_3, %c0_4], %0 {strides = array<i32>} : memref<1x2x256xf32, #tpu.memory_space<vmem>>, vector<1x2x256xf32>,
    %c0_5 = arith.constant 0 : index
    %c2 = arith.constant 2 : index
    %c0_6 = arith.constant 0 : index
    %2 = vector.load %arg1[%c0_5, %c2, %c0_6] : memref<1x4x256xf32, #tpu.memory_space<vmem>>, vector<1x2x256xf32>
    %c0_7 = arith.constant 0 : index
    %c0_8 = arith.constant 0 : index
    %c0_9 = arith.constant 0 : index
    %3 = vector.load %arg3[%c0_7, %c0_8, %c0_9] : memref<1x2x256xf32, #tpu.memory_space<vmem>>, vector<1x2x256xf32>
    tpu.vector_store %arg3[%c0_7, %c0_8, %c0_9], %2 {strides = array<i32>} : memref<1x2x256xf32, #tpu.memory_space<vmem>>, vector<1x2x256xf32>,
    return
  }
  func.func @transform_0(%arg0: i32) -> (i32, i32, i32) {
    %c0_i32 = arith.constant 0 : i32
    %c0_i32_0 = arith.constant 0 : i32
    %c0_i32_1 = arith.constant 0 : i32
    return %arg0, %c0_i32, %c0_i32_0 : i32, i32, i32
  }
  func.func @transform_1(%arg0: i32) -> (i32, i32, i32) {
    %c0_i32 = arith.constant 0 : i32
    %c0_i32_0 = arith.constant 0 : i32
    %c0_i32_1 = arith.constant 0 : i32
    return %arg0, %c0_i32, %c0_i32_0 : i32, i32, i32
  }
  func.func @transform_2(%arg0: i32) -> (i32, i32, i32) {
    %c0_i32 = arith.constant 0 : i32
    %c0_i32_0 = arith.constant 0 : i32
    %c0_i32_1 = arith.constant 0 : i32
    return %arg0, %c0_i32, %c0_i32_0 : i32, i32, i32
  }
}

</mosaic_0001>

<llo_original>
// kernel: tpu_custom_call.1
$region0: #{tpu_custom_call.1}
  #allocation0 [shape = 'u32[]', space=smem, size = 0x4, offset = 0x4, fixed_abs, tag = 'smem constant byte address 0x4 - core index']
  #allocation1 [shape = 'u32[144,128]{1,0:T(1,128)}', space=vmem, size = 0x12000, scoped, tag = 'internal scratch']
  %s0 = inlined_call_operand.hbm [shape: f32[2,4,256], index: 0, kind: input, shape index: {}]
  %s1 = inlined_call_operand.hbm [shape: f32[2,2,256], index: 1, kind: output, shape index: {0}]
  %s2 = inlined_call_operand.hbm [shape: f32[2,2,256], index: 2, kind: output, shape index: {1}]
  %3 = xla_tuple %s1, %s2
  %s4 = sld [smem:[#allocation0]]
  $region49: #{tpu_custom_call.1} parent=0
    _
  %s6 = ssub.s32 1, %s4
  %s7 = scalar_select 0, %s6, %s4
  $region1: #{tpu_custom_call.1} parent=0
    #allocation2 [shape = 'u8[8192]{0}', space=vmem, size = 0x2000, scoped, tag = 'input window, operand 0']
    #allocation3 [shape = 's32[2]{0}', space=sflag, size = 0x8, scoped, tag = 'scoped memory for tpu_custom_call.1']
    #allocation4 [shape = 's32[2]{0}', space=sflag, size = 0x8, scoped, tag = 'scoped memory for tpu_custom_call.1']
    #allocation5 [shape = 'u8[4096]{0}', space=vmem, size = 0x1000, scoped, tag = 'output window, operand 0']
    #allocation6 [shape = 'u8[4096]{0}', space=vmem, size = 0x1000, scoped, tag = 'output window, operand 1']
    #allocation7 [shape = 's32[2]{0}', space=sflag, size = 0x8, scoped, tag = 'scoped memory for tpu_custom_call.1']
    %8 = vsyncpa [#allocation3], 0
    %s9 = scalar_lea.sflag [#allocation3], 1
    %10 = vsyncpa %s9, 0
    %11 = vsyncpa [#allocation4], 0
    %s12 = scalar_lea.sflag [#allocation4], 1
    %13 = vsyncpa %s12, 0
    %14 = vsyncpa [#allocation7], 0
    %s15 = scalar_lea.sflag [#allocation7], 1
    %16 = vsyncpa %s15, 0
    loop: start=0, step=1, limit=4
    $region2: #{tpu_custom_call.1} parent=1 // loop_pre_header
      _
    $region3: #{tpu_custom_call.1} parent=1 // loop_header
      %s18 = sphi 0, %s22
      %p19 = scmp.ge.s32.totalorder %s18, 4
      %s28 = sphi 0, %s30
      %s31 = sphi 0, %s28
      %s32 = sphi 0, %s31
      %s48 = sphi 0, %s32
      %s54 = sphi 0, %s56
      %s57 = sphi 0, %s54
      %s58 = sphi 0, %s57
      %s74 = sphi 0, %s58
      %s80 = sphi 0, %s82
      %s83 = sphi 0, %s80
      %s84 = sphi 0, %s83
      %s100 = sphi 0, %s84
    $region4: #{tpu_custom_call.1} parent=1 // loop_header_branch
      %21 = sbr.rel (%p19) target = $region8
    $region5: #{tpu_custom_call.1} parent=1 // loop_body
      %s23 = ssub.s32 %s18, 1
      %s24 = ssub.s32 %s18, 2
      %s25 = sadd.s32 %s18, 1
      %s26 = ssub.s32 %s18, %s25
      %p27 = scmp.eq.s32.totalorder %s26, 0
      %s29 = sadd.s32 %s28, 1
      %s30 = scalar_select %p27, %s28, %s29
      %p33 = pneg %p27
      %p34 = scmp.eq.s32.totalorder %s18, 1
      %p35 = por %p33, %p34
      %p36 = scmp.ne.s32.totalorder %s28, %s31
      %p37 = scmp.eq.s32.totalorder %s18, 0
      %p38 = por %p36, %p37
      %p39 = scmp.ne.s32.totalorder %s28, %s31
      %p40 = scmp.eq.s32.totalorder %s23, 1
      %p41 = por %p39, %p40
      %p42 = scmp.ne.s32.totalorder %s31, %s32
      %p43 = scmp.eq.s32.totalorder %s23, 0
      %p44 = por %p42, %p43
      %p45 = scmp.ne.s32.totalorder %s31, %s32
      %p46 = scmp.eq.s32.totalorder %s24, 1
      %p47 = por %p45, %p46
      %p49 = scmp.ne.s32.totalorder %s32, %s48
      %p50 = scmp.eq.s32.totalorder %s24, 0
      %p51 = por %p49, %p50
      %s52 = ssub.s32 %s18, %s25
      %p53 = scmp.eq.s32.totalorder %s52, 0
      %s55 = sadd.s32 %s54, 1
      %s56 = scalar_select %p53, %s54, %s55
      %p59 = pneg %p53
      %p60 = scmp.eq.s32.totalorder %s18, 1
      %p61 = por %p59, %p60
      %p62 = scmp.ne.s32.totalorder %s54, %s57
      %p63 = scmp.eq.s32.totalorder %s18, 0
      %p64 = por %p62, %p63
      %p65 = scmp.ne.s32.totalorder %s54, %s57
      %p66 = scmp.eq.s32.totalorder %s23, 1
      %p67 = por %p65, %p66
      %p68 = scmp.ne.s32.totalorder %s57, %s58
      %p69 = scmp.eq.s32.totalorder %s23, 0
      %p70 = por %p68, %p69
      %p71 = scmp.ne.s32.totalorder %s57, %s58
      %p72 = scmp.eq.s32.totalorder %s24, 1
      %p73 = por %p71, %p72
      %p75 = scmp.ne.s32.totalorder %s58, %s74
      %p76 = scmp.eq.s32.totalorder %s24, 0
      %p77 = por %p75, %p76
      %s78 = ssub.s32 %s18, %s25
      %p79 = scmp.eq.s32.totalorder %s78, 0
      %s81 = sadd.s32 %s80, 1
      %s82 = scalar_select %p79, %s80, %s81
      %p85 = pneg %p79
      %p86 = scmp.eq.s32.totalorder %s18, 1
      %p87 = por %p85, %p86
      %p88 = scmp.ne.s32.totalorder %s80, %s83
      %p89 = scmp.eq.s32.totalorder %s18, 0
      %p90 = por %p88, %p89
      %p91 = scmp.ne.s32.totalorder %s80, %s83
      %p92 = scmp.eq.s32.totalorder %s23, 1
      %p93 = por %p91, %p92
      %p94 = scmp.ne.s32.totalorder %s83, %s84
      %p95 = scmp.eq.s32.totalorder %s23, 0
      %p96 = por %p94, %p95
      %p97 = scmp.ne.s32.totalorder %s83, %s84
      %p98 = scmp.eq.s32.totalorder %s24, 1
      %p99 = por %p97, %p98
      %p101 = scmp.ne.s32.totalorder %s84, %s100
      %p102 = scmp.eq.s32.totalorder %s24, 0
      %p103 = por %p101, %p102
      %p104 = scmp.le.s32.totalorder 1, %s18
      %p105 = scmp.lt.s32.totalorder %s18, 3
      %p106 = pnand %p104, %p105
      %p107 = pneg %p106
      // Predicated region
      $region9: #{tpu_custom_call.1} parent=5 // pred_check
        _
      $region10: #{tpu_custom_call.1} parent=5 // pred_check_branch
        %109 = sbr.rel (%p106) target = $region12
      $region11: #{tpu_custom_call.1} parent=5 // pred_region
        %s110 = ssub.s32 %s18, 1
      $region12: #{tpu_custom_call.1} parent=5 // pred_fallthru
        _
      %p111 = scmp.lt.s32.totalorder %s18, 2
      // Predicated region
      $region13: #{tpu_custom_call.1} parent=5 // pred_check
        %p112 = pneg %p111
      $region14: #{tpu_custom_call.1} parent=5 // pred_check_branch
        %114 = sbr.rel (%p112) target = $region16
      $region15: #{tpu_custom_call.1} parent=5 // pred_region
        // Predicated region
        $region17: #{tpu_custom_call.1} parent=15 // pred_check
          %p115 = pneg %p38
        $region18: #{tpu_custom_call.1} parent=15 // pred_check_branch
          %117 = sbr.rel (%p115) target = $region20
        $region19: #{tpu_custom_call.1} parent=15 // pred_region
          %s118 = sand.u32 %s28, 1
          %s119 = scalar_lea.sflag [#allocation3], %s118
          %s120 = sand.u32 %s28, 1
          %s121 = smul.addr %s120, 8
          %s122 = scalar_lea.vmem [#allocation2], %s121
          %s124 = ssub.s32 128, 128
          %125 = vsyncadd %s119, %s124
          %s126 = smul.addr %s18, 2
          %s127 = smul.addr %s126, 64
          %s128 = scalar_lea.hbm %s0, %s127
          %s130 = sshll.u32 %s122, 4
          %s131 = int_to_ptr.vmem [resolvable:$true] %s130
          %133 = dma.hbm_to_vmem [thread:$0]  %s128, 128, %s131, %s119
        $region20: #{tpu_custom_call.1} parent=15 // pred_fallthru
          _
      $region16: #{tpu_custom_call.1} parent=5 // pred_fallthru
        _
      %p134 = scmp.le.s32.totalorder 1, %s18
      %p135 = scmp.lt.s32.totalorder %s18, 3
      %p136 = pnand %p134, %p135
      %p137 = pneg %p136
      // Predicated region
      $region21: #{tpu_custom_call.1} parent=5 // pred_check
        _
      $region22: #{tpu_custom_call.1} parent=5 // pred_check_branch
        %139 = sbr.rel (%p136) target = $region24
      $region23: #{tpu_custom_call.1} parent=5 // pred_region
        %s140 = ssub.s32 %s18, 1
        %s141 = sand.u32 %s31, 1
        %s142 = scalar_lea.sflag [#allocation3], %s141
        %s143 = sand.u32 %s31, 1
        %s144 = smul.addr %s143, 8
        %s145 = scalar_lea.vmem [#allocation2], %s144
        // Predicated region
        $region25: #{tpu_custom_call.1} parent=23 // pred_check
          %p146 = pneg %p44
        $region26: #{tpu_custom_call.1} parent=23 // pred_check_branch
          %148 = sbr.rel (%p146) target = $region28
        $region27: #{tpu_custom_call.1} parent=23 // pred_region
          %149 = dma.done %s142, 128
        $region28: #{tpu_custom_call.1} parent=23 // pred_fallthru
          _
        %s150 = sand.u32 %s31, 1
        %s151 = scalar_lea.sflag [#allocation3], %s150
        %s152 = sand.u32 %s31, 1
        %s153 = smul.addr %s152, 8
        %s154 = scalar_lea.vmem [#allocation2], %s153
        %p155 = pneg %p44
        %p156 = pneg %p41
        %p157 = pneg %p70
        %p158 = pneg %p67
        %s159 = sand.u32 %s57, 1
        %s160 = scalar_lea.sflag [#allocation4], %s159
        %s161 = sand.u32 %s57, 1
        %s162 = smul.addr %s161, 4
        %s163 = scalar_lea.vmem [#allocation5], %s162
        %p164 = pneg %p96
        %p165 = pneg %p93
        %s166 = sand.u32 %s83, 1
        %s167 = scalar_lea.sflag [#allocation7], %s166
        %s168 = sand.u32 %s83, 1
        %s169 = smul.addr %s168, 4
        %s170 = scalar_lea.vmem [#allocation6], %s169
        %v171 = vld [vmem:[%s145] sm:$0x33]
        %v174 = vunpack.c.l.s4 1983009808
        %v175 = vunpack.c.0.s8 %v174
        %v176 = vlaneseq
        %v177 = vshrl.u32 %v176, 7
        %v178 = vsub.s32 %v175, %v177
        %v179 = vrot.slane %v171, %v178
        %181 = vst [vmem:[%s163] sm:$0xf] %v179
        %v182 = vld [vmem:[%s145] sm:$0xcc]
        %v185 = vunpack.c.l.s4 1983009808
        %v186 = vunpack.c.0.s8 %v185
        %v187 = vlaneseq
        %v188 = vshrl.u32 %v187, 7
        %v189 = vsub.s32 %v186, %v188
        %v190 = vrot.slane %v182, %v189
        %v191 = vcombine.high %v190, %v190
        %193 = vst [vmem:[%s170] sm:$0xf] %v191
        %s194 = sand.u32 %s57, 1
        %s195 = scalar_lea.sflag [#allocation4], %s194
        %s196 = sand.u32 %s57, 1
        %s197 = smul.addr %s196, 4
        %s198 = scalar_lea.vmem [#allocation5], %s197
        %s199 = sand.u32 %s83, 1
        %s200 = scalar_lea.sflag [#allocation7], %s199
        %s201 = sand.u32 %s83, 1
        %s202 = smul.addr %s201, 4
        %s203 = scalar_lea.vmem [#allocation6], %s202
        // Predicated region
        $region29: #{tpu_custom_call.1} parent=23 // pred_check
          %p204 = pneg %p67
        $region30: #{tpu_custom_call.1} parent=23 // pred_check_branch
          %206 = sbr.rel (%p204) target = $region32
        $region31: #{tpu_custom_call.1} parent=23 // pred_region
          %s208 = ssub.s32 64, 64
          %209 = vsyncadd %s195, %s208
          %s210 = smul.addr %s23, 2
          %s211 = smul.addr %s210, 32
          %s212 = scalar_lea.hbm %s1, %s211
          %s214 = sshll.u32 %s198, 4
          %s215 = int_to_ptr.vmem [resolvable:$true] %s214
          %217 = dma.vmem_to_hbm [thread:$0]  %s215, 64, %s212, %s195
        $region32: #{tpu_custom_call.1} parent=23 // pred_fallthru
          _
        // Predicated region
        $region33: #{tpu_custom_call.1} parent=23 // pred_check
          %p218 = pneg %p93
        $region34: #{tpu_custom_call.1} parent=23 // pred_check_branch
          %220 = sbr.rel (%p218) target = $region36
        $region35: #{tpu_custom_call.1} parent=23 // pred_region
          %s222 = ssub.s32 64, 64
          %223 = vsyncadd %s200, %s222
          %s224 = smul.addr %s23, 2
          %s225 = smul.addr %s224, 32
          %s226 = scalar_lea.hbm %s2, %s225
          %s228 = sshll.u32 %s203, 4
          %s229 = int_to_ptr.vmem [resolvable:$true] %s228
          %231 = dma.vmem_to_hbm [thread:$0]  %s229, 64, %s226, %s200
        $region36: #{tpu_custom_call.1} parent=23 // pred_fallthru
          _
      $region24: #{tpu_custom_call.1} parent=5 // pred_fallthru
        _
      %p232 = scmp.le.s32.totalorder 2, %s18
      // Predicated region
      $region37: #{tpu_custom_call.1} parent=5 // pred_check
        %p233 = pneg %p232
      $region38: #{tpu_custom_call.1} parent=5 // pred_check_branch
        %235 = sbr.rel (%p233) target = $region40
      $region39: #{tpu_custom_call.1} parent=5 // pred_region
        %s236 = ssub.s32 %s18, 2
        // Predicated region
        $region41: #{tpu_custom_call.1} parent=39 // pred_check
          %p237 = pneg %p73
        $region42: #{tpu_custom_call.1} parent=39 // pred_check_branch
          %239 = sbr.rel (%p237) target = $region44
        $region43: #{tpu_custom_call.1} parent=39 // pred_region
          %s240 = sand.u32 %s58, 1
          %s241 = scalar_lea.sflag [#allocation4], %s240
          %s242 = sand.u32 %s58, 1
          %s243 = smul.addr %s242, 4
          %s244 = scalar_lea.vmem [#allocation5], %s243
          %245 = dma.done %s241, 64
        $region44: #{tpu_custom_call.1} parent=39 // pred_fallthru
          _
        // Predicated region
        $region45: #{tpu_custom_call.1} parent=39 // pred_check
          %p246 = pneg %p99
        $region46: #{tpu_custom_call.1} parent=39 // pred_check_branch
          %248 = sbr.rel (%p246) target = $region48
        $region47: #{tpu_custom_call.1} parent=39 // pred_region
          %s249 = sand.u32 %s84, 1
          %s250 = scalar_lea.sflag [#allocation7], %s249
          %s251 = sand.u32 %s84, 1
          %s252 = smul.addr %s251, 4
          %s253 = scalar_lea.vmem [#allocation6], %s252
          %254 = dma.done %s250, 64
        $region48: #{tpu_custom_call.1} parent=39 // pred_fallthru
          _
      $region40: #{tpu_custom_call.1} parent=5 // pred_fallthru
        _
    $region6: #{tpu_custom_call.1} parent=1 // loop_footer
      %s22 = sadd.s32 1, %s18
    $region7: #{tpu_custom_call.1} parent=1 // loop_footer_branch
      %17 = sbr.rel target = $region3
    $region8: #{tpu_custom_call.1} parent=1 // loop_exit
      _
    %255 = vsyncpa [#allocation3], 1
    %s256 = scalar_lea.sflag [#allocation3], 1
    %257 = vsyncpa %s256, 1
    %258 = vsyncpa [#allocation4], 1
    %s259 = scalar_lea.sflag [#allocation4], 1
    %260 = vsyncpa %s259, 1
    %261 = vsyncpa [#allocation7], 1
    %s262 = scalar_lea.sflag [#allocation7], 1
    %263 = vsyncpa %s262, 1

</llo_original>
